<compile_context>
chip_gen: v6e
topology: v6e:2x2x1
jax: 0.10.0
libtpu: 0.0.40
codegen_flags: <defaults>
</compile_context>

<pallas_src>
import functools
import math

import numpy as np
import jax
import jax.numpy as jnp
from jax.experimental import pallas as pl
from jax.experimental.pallas import tpu as pltpu


# ----------------------------------------------------------------------------
# Pallas kernels: channel-mixing matmuls for the Conv2d layers.
# ----------------------------------------------------------------------------

def _conv2tap_relu_kernel(x0_ref, x1_ref, w0_ref, w1_ref, b_ref, o_ref):
    # x*_ref: (C_in, TILE_M); w*_ref: (C_out, C_in); b_ref: (C_out, 1)
    # o_ref : (C_out, TILE_M) -- lane-dense output tile.
    acc = jnp.dot(w0_ref[...], x0_ref[...], preferred_element_type=jnp.float32)
    acc = acc + jnp.dot(w1_ref[...], x1_ref[...], preferred_element_type=jnp.float32)
    acc = acc + b_ref[...]
    o_ref[...] = jnp.maximum(acc, 0.0).astype(o_ref.dtype)


def _conv1tap_kernel(x_ref, w_ref, b_ref, o_ref):
    acc = jnp.dot(w_ref[...], x_ref[...], preferred_element_type=jnp.float32)
    o_ref[...] = (acc + b_ref[...]).astype(o_ref.dtype)


_LANE = 128
_VMEM_TILE_BUDGET = 12 * 1024 * 1024   # keep tiles well under v7x scoped VMEM
_VMEM_LIMIT = 32 * 1024 * 1024         # explicit scoped-VMEM cap (ok on v5e/v6e/v7x)


def _round_up(x, m):
    return (x + m - 1) // m * m


def _pick_tile_m(m_total, f32_per_col, max_tile):
    """Largest lane tile (multiple of 128) whose double-buffered working set
    stays under the VMEM budget (v7x has only 64 MiB physical VMEM)."""
    tile = _VMEM_TILE_BUDGET // (4 * f32_per_col)
    tile = max(_LANE, (min(tile, max_tile) // _LANE) * _LANE)
    return min(tile, _round_up(m_total, _LANE))


def _channel_matmul_2tap(x0, x1, w0, w1, bias, *, max_tile=2048, compute_dtype=None):
    """y[b,o,m] = relu(sum_i w0[o,i]*x0[b,i,m] + w1[o,i]*x1[b,i,m] + bias[o])."""
    B, C_in, M = x0.shape
    C_out = w0.shape[0]
    if compute_dtype is not None:   # bf16 at the HBM boundary, f32 accumulate
        x0, x1 = x0.astype(compute_dtype), x1.astype(compute_dtype)
        w0, w1 = w0.astype(compute_dtype), w1.astype(compute_dtype)
    f32_per_col = 2 * (2 * C_in + C_out)            # double-buffered in+out columns
    tile = _pick_tile_m(M, f32_per_col, max_tile)
    M_pad = _round_up(M, tile)
    if M_pad != M:
        pad = ((0, 0), (0, 0), (0, M_pad - M))
        x0, x1 = jnp.pad(x0, pad), jnp.pad(x1, pad)
    grid = (B, M_pad // tile)
    bias2 = bias.reshape(C_out, 1).astype(jnp.float32)
    itemsize = x0.dtype.itemsize
    cost = pl.CostEstimate(
        flops=4 * B * M_pad * C_in * C_out,
        transcendentals=0,
        bytes_accessed=itemsize * 2 * B * C_in * M_pad + 4 * B * C_out * M_pad,
    )
    out = pl.pallas_call(
        _conv2tap_relu_kernel,
        out_shape=jax.ShapeDtypeStruct((B, C_out, M_pad), jnp.float32),
        grid=grid,
        in_specs=[
            pl.BlockSpec((None, C_in, tile), lambda b, m: (b, 0, m)),
            pl.BlockSpec((None, C_in, tile), lambda b, m: (b, 0, m)),
            pl.BlockSpec((C_out, C_in), lambda b, m: (0, 0)),   # resident weight (LHS)
            pl.BlockSpec((C_out, C_in), lambda b, m: (0, 0)),
            pl.BlockSpec((C_out, 1), lambda b, m: (0, 0)),
        ],
        out_specs=pl.BlockSpec((None, C_out, tile), lambda b, m: (b, 0, m)),
        compiler_params=pltpu.CompilerParams(
            dimension_semantics=("parallel", "parallel"),
            vmem_limit_bytes=_VMEM_LIMIT,
        ),
        cost_estimate=cost,
    )(x0, x1, w0, w1, bias2)
    return out[:, :, :M]


def _channel_matmul_1tap(x, w, bias, *, max_tile=2048, compute_dtype=None):
    """y[b,o,m] = sum_i w[o,i]*x[b,i,m] + bias[o]   (no activation)."""
    B, C_in, M = x.shape
    C_out = w.shape[0]
    if compute_dtype is not None:
        x, w = x.astype(compute_dtype), w.astype(compute_dtype)
    f32_per_col = 2 * (C_in + C_out)
    tile = _pick_tile_m(M, f32_per_col, max_tile)
    M_pad = _round_up(M, tile)
    if M_pad != M:
        x = jnp.pad(x, ((0, 0), (0, 0), (0, M_pad - M)))
    grid = (B, M_pad // tile)
    bias2 = bias.reshape(C_out, 1).astype(jnp.float32)
    itemsize = x.dtype.itemsize
    cost = pl.CostEstimate(
        flops=2 * B * M_pad * C_in * C_out,
        transcendentals=0,
        bytes_accessed=itemsize * B * C_in * M_pad + 4 * B * C_out * M_pad,
    )
    out = pl.pallas_call(
        _conv1tap_kernel,
        out_shape=jax.ShapeDtypeStruct((B, C_out, M_pad), jnp.float32),
        grid=grid,
        in_specs=[
            pl.BlockSpec((None, C_in, tile), lambda b, m: (b, 0, m)),
            pl.BlockSpec((C_out, C_in), lambda b, m: (0, 0)),
            pl.BlockSpec((C_out, 1), lambda b, m: (0, 0)),
        ],
        out_specs=pl.BlockSpec((None, C_out, tile), lambda b, m: (b, 0, m)),
        compiler_params=pltpu.CompilerParams(
            dimension_semantics=("parallel", "parallel"),
            vmem_limit_bytes=_VMEM_LIMIT,
        ),
        cost_estimate=cost,
    )(x, w, bias2)
    return out[:, :, :M]


# ----------------------------------------------------------------------------
# Module pieces built on the kernels (Pallas) + small XLA glue.
# ----------------------------------------------------------------------------

def tconv1_forward(x, weight, bias, Tp, *, max_tile=2048, compute_dtype=None):
    """Tconv1: Conv2d(C_in->C_out, (1,2), valid) + wrap-pad along time to Tp + ReLU.
    x: (B, C_in, N, T) NCHW; weight: (C_out, C_in, 1, 2); bias: (C_out,)."""
    B, C_in, N, T = x.shape
    C_out = weight.shape[0]
    T_out = T - 1
    M = N * T_out
    # Two temporal taps as separate, un-concatenated channels-first inputs.
    x0 = x[:, :, :, :-1].reshape(B, C_in, M)
    x1 = x[:, :, :, 1:].reshape(B, C_in, M)
    y = _channel_matmul_2tap(x0, x1, weight[:, :, 0, 0], weight[:, :, 0, 1], bias,
                             max_tile=max_tile, compute_dtype=compute_dtype)
    y = y.reshape(B, C_out, N, T_out)          # already NCHW: no output re-layout pass
    if T_out < Tp:
        # NOTE: wrap-pad is a few time-steps of duplication; kept as tiny XLA glue
        # (ReLU is already applied inside the kernel and commutes with the concat).
        pad = Tp - T_out
        y = jnp.concatenate([y[:, :, :, -pad:], y], axis=3)
    return y


def conv1x1_forward(x, weight, bias, *, max_tile=2048, compute_dtype=None):
    """1x1 Conv2d (residual path, no activation). x: (B, C_in, N, T)."""
    B, C_in, N, T = x.shape
    C_out = weight.shape[0]
    y = _channel_matmul_1tap(x.reshape(B, C_in, N * T), weight[:, :, 0, 0], bias,
                             max_tile=max_tile, compute_dtype=compute_dtype)
    return y.reshape(B, C_out, N, T)


# Pure-JAX references for the Pallas-backed convs (used for the self-check).
def _tconv1_ref(x, weight, bias, Tp):
    hi = jax.lax.Precision.HIGHEST
    y = (jnp.einsum('bint,oi->bont', x[:, :, :, :-1], weight[:, :, 0, 0], precision=hi)
         + jnp.einsum('bint,oi->bont', x[:, :, :, 1:], weight[:, :, 0, 1], precision=hi)
         + bias[None, :, None, None])
    T_out = y.shape[-1]
    if T_out < Tp:
        y = jnp.concatenate([y[:, :, :, -(Tp - T_out):], y], axis=3)
    return jnp.maximum(y, 0.0)


def _conv1x1_ref(x, weight, bias):
    hi = jax.lax.Precision.HIGHEST
    return (jnp.einsum('bint,oi->bont', x, weight[:, :, 0, 0], precision=hi)
            + bias[None, :, None, None])


def _channel_attention(x, w1, b1, w2, b2):
    # SE block over the time-channel dim of x: (B, C, H, W).
    att = jnp.mean(x, axis=(2, 3))                       # AvgPool2d((H, W)) -> (B, C)
    att = jnp.maximum(att @ w1.T + b1, 0.0)
    att = jax.nn.sigmoid(att @ w2.T + b2)
    return x * att[:, :, None, None]


def _graph_conv(x, cheb, theta):
    # Chebyshev graph convolution (K=3), matches GraphConvolution.forward:
    #   out[b,t,o,m] = sum_{k,n,f} cheb[k,n,m] * x[b,t,f,n] * theta[k,f,o]
    return jnp.einsum('knm,btfn,kfo->btom', cheb, x, theta,
                      precision=jax.lax.Precision.HIGHEST)


def _layer_norm_last(x, gamma, beta, eps=1e-5):
    mu = jnp.mean(x, axis=-1, keepdims=True)
    var = jnp.mean(jnp.square(x - mu), axis=-1, keepdims=True)
    return (x - mu) * jax.lax.rsqrt(var + eps) * gamma + beta


def _branch1_block_forward(x, p, Tp, use_pallas):
    # x: (B, t, F_in, N)
    x_init = x
    x = _channel_attention(x, p['att_w1'], p['att_b1'], p['att_w2'], p['att_b2'])
    xg = jnp.maximum(_graph_conv(x, p['cheb'], p['theta1']), 0.0)
    xg = jnp.maximum(_graph_conv(xg, p['cheb'], p['theta2']), 0.0)      # (B, t, F_out, N)

    tconv = tconv1_forward if use_pallas else _tconv1_ref
    conv1x1 = conv1x1_forward if use_pallas else _conv1x1_ref

    xt = tconv(jnp.transpose(xg, (0, 2, 3, 1)), p['tc1_w'], p['tc1_b'], Tp)  # (B,F_out,N,T1)
    xt = tconv(xt, p['tc2_w'], p['tc2_b'], Tp)                               # (B,F_out,N,T2)
    xt = jnp.transpose(xt, (0, 3, 1, 2))                                     # (B,T2,F_out,N)

    t_short = xg.shape[1] - xt.shape[1]
    x_res = jnp.transpose(x_init[:, t_short:, :, :], (0, 2, 3, 1))           # (B,F_in,N,T2)
    x_res = conv1x1(x_res, p['res_w'], p['res_b'])                           # (B,F_out,N,T2)
    x_res = jnp.transpose(x_res, (0, 3, 1, 2))                               # (B,T2,F_out,N)

    x = xt + x_res
    return jnp.maximum(_layer_norm_last(x, p['ln_g'], p['ln_b']), 0.0)


@functools.partial(jax.jit, static_argnames=('Tp', 'use_pallas'))
def branch1_forward(x, params, Tp, use_pallas=True):
    """Branch1 forward.  x: (B, Tr, feature, N)  ->  (B, Tp, N, 1)."""
    x = _branch1_block_forward(x, params['block1'], Tp, use_pallas)
    x = _branch1_block_forward(x, params['block2'], Tp, use_pallas)
    B, T_out, F, N = x.shape
    x = jnp.transpose(x, (0, 3, 1, 2)).reshape(B, N, T_out * F)   # (B, N, T_out*F)
    x = x @ params['fc_w'].T + params['fc_b']                     # (B, N, Tp)
    x = jnp.transpose(x[:, :, :, None], (0, 2, 1, 3))             # (B, Tp, N, 1)
    x = jnp.maximum(x, 0.0)
    # TODO(synk): nn.Dropout is training-mode randomness; forward here uses
    # eval-mode semantics (identity), matching model.eval() inference.
    return x


# ----------------------------------------------------------------------------
# Parameter / graph-basis initialization (deterministic).
# ----------------------------------------------------------------------------

def _linear_init(key, out_f, in_f):
    kw_, kb_ = jax.random.split(key)
    bound = 1.0 / math.sqrt(in_f)
    return (jax.random.uniform(kw_, (out_f, in_f), jnp.float32, -bound, bound),
            jax.random.uniform(kb_, (out_f,), jnp.float32, -bound, bound))


def _conv_init(key, out_c, in_c, kh, kw_):
    k1, k2 = jax.random.split(key)
    bound = 1.0 / math.sqrt(in_c * kh * kw_)
    return (jax.random.uniform(k1, (out_c, in_c, kh, kw_), jnp.float32, -bound, bound),
            jax.random.uniform(k2, (out_c,), jnp.float32, -bound, bound))


def _scaled_laplacian(W):
    D = np.diag(np.sum(W, axis=1))
    L = D - W
    lambda_max = np.max(np.linalg.eigvals(L).real)
    return (2.0 * L) / lambda_max - np.identity(W.shape[0])


def _cheb_polynomials(L_tilde, K=3):
    N = L_tilde.shape[0]
    polys = [np.identity(N), L_tilde.copy()]
    for i in range(2, K):
        # NOTE: elementwise product, exactly as in the reference PyTorch code.
        polys.append(2 * L_tilde * polys[i - 1] - polys[i - 2])
    return np.stack(polys).astype(np.float32)


def _init_block(key, cheb, t, f_in, f_out, N):
    ks = jax.random.split(key, 7)
    red = t // 4
    att_w1, att_b1 = _linear_init(ks[0], red, t)
    att_w2, att_b2 = _linear_init(ks[1], t, red)
    theta1 = 0.1 * jax.random.normal(ks[2], (3, f_in, f_out), jnp.float32)
    theta2 = 0.1 * jax.random.normal(ks[3], (3, f_out, f_out), jnp.float32)
    tc1_w, tc1_b = _conv_init(ks[4], f_out, f_out, 1, 2)
    tc2_w, tc2_b = _conv_init(ks[5], f_out, f_out, 1, 2)
    res_w, res_b = _conv_init(ks[6], f_out, f_in, 1, 1)
    return dict(att_w1=att_w1, att_b1=att_b1, att_w2=att_w2, att_b2=att_b2,
                cheb=cheb, theta1=theta1, theta2=theta2,
                tc1_w=tc1_w, tc1_b=tc1_b, tc2_w=tc2_w, tc2_b=tc2_b,
                res_w=res_w, res_b=res_b,
                ln_g=jnp.ones((N,), jnp.float32), ln_b=jnp.zeros((N,), jnp.float32))


if __name__ == "__main__":
    # Small deterministic example: x is (B, Tr, feature, N), like Branch1 expects.
    B, Tr, feature, N = 2, 8, 4, 16
    Tp, filt = 5, 8

    key = jax.random.PRNGKey(0)
    k_x, k_adj, k_b1, k_b2, k_fc, k_cx, k_cw = jax.random.split(key, 7)

    x = jax.random.normal(k_x, (B, Tr, feature, N), dtype=jnp.float32)

    # Adjacency -> scaled Laplacian -> Chebyshev basis (host-side init, mirrors
    # GraphConvolution.__init__ which uses numpy/scipy eigs at construction time).
    W = np.array(jax.random.uniform(k_adj, (N, N), jnp.float32))
    W = (W + W.T) / 2.0
    np.fill_diagonal(W, 0.0)
    cheb = jnp.asarray(_cheb_polynomials(_scaled_laplacian(W), K=3))

    params = dict(
        block1=_init_block(k_b1, cheb, Tr, feature, filt, N),
        block2=_init_block(k_b2, cheb, max(Tr - 2, Tp), filt, filt, N),
    )
    params['fc_w'], params['fc_b'] = _linear_init(k_fc, Tp, filt * max(Tr - 4, Tp))

    # --- standalone check of the Pallas conv kernel with a multi-tile M grid ---
    xc = jax.random.normal(k_cx, (2, filt, 48, 9), jnp.float32)   # M = 48*8 -> 3 tiles of 128
    wc, bc = _conv_init(k_cw, filt, filt, 1, 2)
    got = tconv1_forward(xc, wc, bc, Tp, max_tile=128)
    want = _tconv1_ref(xc, wc, bc, Tp)
    assert got.shape == want.shape, (got.shape, want.shape)
    assert bool(jnp.allclose(got, want, atol=1e-4, rtol=1e-4)), \
        float(jnp.max(jnp.abs(got - want)))
    # bf16-at-the-HBM-boundary variant (halves input DMA bytes on v6e/v7x).
    got_bf16 = tconv1_forward(xc, wc, bc, Tp, max_tile=128, compute_dtype=jnp.bfloat16)
    assert bool(jnp.allclose(got_bf16, want, atol=5e-2, rtol=5e-2))

    # --- full Branch1 forward: Pallas conv kernels vs pure-JAX reference ---
    out = branch1_forward(x, params, Tp=Tp, use_pallas=True)
    jax.block_until_ready(out)
    ref = branch1_forward(x, params, Tp=Tp, use_pallas=False)
    jax.block_until_ready(ref)

    assert out.shape == (B, Tp, N, 1), out.shape
    assert bool(jnp.allclose(out, ref, atol=2e-3, rtol=2e-3)), \
        float(jnp.max(jnp.abs(out - ref)))

    print("KERNEL_OK")
</pallas_src>

<mosaic_0001>
module attributes {stable_mosaic.version = 11 : i64} {
  func.func @_conv2tap_relu_kernel(%arg0: i32, %arg1: i32, %arg2: memref<1x8x128xf32, #tpu.memory_space<vmem>>, %arg3: memref<1x8x128xf32, #tpu.memory_space<vmem>>, %arg4: memref<8x8xf32, #tpu.memory_space<vmem>>, %arg5: memref<8x8xf32, #tpu.memory_space<vmem>>, %arg6: memref<8x1xf32, #tpu.memory_space<vmem>>, %arg7: memref<1x8x128xf32, #tpu.memory_space<vmem>>) attributes {dimension_semantics = [#tpu.dimension_semantics<parallel>, #tpu.dimension_semantics<parallel>], iteration_bounds = array<i64: 2, 3>, scalar_prefetch = 0 : i64, scratch_operands = 0 : i64, tpu.core_type = #tpu.core_type<tc>, window_params = [{transform_indices = @transform_0, window_bounds = array<i64: 1, 8, 128>}, {transform_indices = @transform_1, window_bounds = array<i64: 1, 8, 128>}, {pipeline_mode = #tpu.pipeline_mode<synchronous>, transform_indices = @transform_2, window_bounds = array<i64: 8, 8>}, {pipeline_mode = #tpu.pipeline_mode<synchronous>, transform_indices = @transform_3, window_bounds = array<i64: 8, 8>}, {pipeline_mode = #tpu.pipeline_mode<synchronous>, transform_indices = @transform_4, window_bounds = array<i64: 8, 1>}, {transform_indices = @transform_5, window_bounds = array<i64: 1, 8, 128>}]} {
    %c0 = arith.constant 0 : index
    %c0_0 = arith.constant 0 : index
    %0 = vector.load %arg4[%c0, %c0_0] : memref<8x8xf32, #tpu.memory_space<vmem>>, vector<8x8xf32>
    %c0_1 = arith.constant 0 : index
    %c0_2 = arith.constant 0 : index
    %c0_3 = arith.constant 0 : index
    %1 = vector.load %arg2[%c0_1, %c0_2, %c0_3] : memref<1x8x128xf32, #tpu.memory_space<vmem>>, vector<1x8x128xf32>
    %2 = vector.shape_cast %1 : vector<1x8x128xf32> to vector<8x128xf32>
    %cst = arith.constant dense<0.000000e+00> : vector<8x128xf32>
    %3 = tpu.matmul %0, %2, %cst {dimension_numbers = #tpu.dot_dimension_numbers<[1], [0], [0], [1], [0, 0, 1, 1], [], []>} : vector<8x8xf32>, vector<8x128xf32>, vector<8x128xf32> -> vector<8x128xf32>
    %c0_4 = arith.constant 0 : index
    %c0_5 = arith.constant 0 : index
    %4 = vector.load %arg5[%c0_4, %c0_5] : memref<8x8xf32, #tpu.memory_space<vmem>>, vector<8x8xf32>
    %c0_6 = arith.constant 0 : index
    %c0_7 = arith.constant 0 : index
    %c0_8 = arith.constant 0 : index
    %5 = vector.load %arg3[%c0_6, %c0_7, %c0_8] : memref<1x8x128xf32, #tpu.memory_space<vmem>>, vector<1x8x128xf32>
    %6 = vector.shape_cast %5 : vector<1x8x128xf32> to vector<8x128xf32>
    %cst_9 = arith.constant dense<0.000000e+00> : vector<8x128xf32>
    %7 = tpu.matmul %4, %6, %cst_9 {dimension_numbers = #tpu.dot_dimension_numbers<[1], [0], [0], [1], [0, 0, 1, 1], [], []>} : vector<8x8xf32>, vector<8x128xf32>, vector<8x128xf32> -> vector<8x128xf32>
    %8 = arith.addf %3, %7 : vector<8x128xf32>
    %c0_10 = arith.constant 0 : index
    %c0_11 = arith.constant 0 : index
    %9 = vector.load %arg6[%c0_10, %c0_11] : memref<8x1xf32, #tpu.memory_space<vmem>>, vector<8x1xf32>
    %10 = vector.broadcast %9 : vector<8x1xf32> to vector<8x128xf32>
    %11 = arith.addf %8, %10 : vector<8x128xf32>
    %cst_12 = arith.constant 0.000000e+00 : f32
    %12 = vector.broadcast %cst_12 : f32 to vector<8x128xf32>
    %13 = arith.maximumf %11, %12 : vector<8x128xf32>
    %c0_13 = arith.constant 0 : index
    %c0_14 = arith.constant 0 : index
    %c0_15 = arith.constant 0 : index
    %14 = vector.load %arg7[%c0_13, %c0_14, %c0_15] : memref<1x8x128xf32, #tpu.memory_space<vmem>>, vector<1x8x128xf32>
    %15 = vector.shape_cast %14 : vector<1x8x128xf32> to vector<8x128xf32>
    %16 = vector.shape_cast %13 : vector<8x128xf32> to vector<1x8x128xf32>
    tpu.vector_store %arg7[%c0_13, %c0_14, %c0_15], %16 {strides = array<i32>} : memref<1x8x128xf32, #tpu.memory_space<vmem>>, vector<1x8x128xf32>,
    return
  }
  func.func @transform_0(%arg0: i32, %arg1: i32) -> (i32, i32, i32) {
    %c0_i32 = arith.constant 0 : i32
    %c0_i32_0 = arith.constant 0 : i32
    return %arg0, %c0_i32, %arg1 : i32, i32, i32
  }
  func.func @transform_1(%arg0: i32, %arg1: i32) -> (i32, i32, i32) {
    %c0_i32 = arith.constant 0 : i32
    %c0_i32_0 = arith.constant 0 : i32
    return %arg0, %c0_i32, %arg1 : i32, i32, i32
  }
  func.func @transform_2(%arg0: i32, %arg1: i32) -> (i32, i32) {
    %c0_i32 = arith.constant 0 : i32
    %c0_i32_0 = arith.constant 0 : i32
    %c0_i32_1 = arith.constant 0 : i32
    return %c0_i32, %c0_i32_0 : i32, i32
  }
  func.func @transform_3(%arg0: i32, %arg1: i32) -> (i32, i32) {
    %c0_i32 = arith.constant 0 : i32
    %c0_i32_0 = arith.constant 0 : i32
    %c0_i32_1 = arith.constant 0 : i32
    return %c0_i32, %c0_i32_0 : i32, i32
  }
  func.func @transform_4(%arg0: i32, %arg1: i32) -> (i32, i32) {
    %c0_i32 = arith.constant 0 : i32
    %c0_i32_0 = arith.constant 0 : i32
    %c0_i32_1 = arith.constant 0 : i32
    return %c0_i32, %c0_i32_0 : i32, i32
  }
  func.func @transform_5(%arg0: i32, %arg1: i32) -> (i32, i32, i32) {
    %c0_i32 = arith.constant 0 : i32
    %c0_i32_0 = arith.constant 0 : i32
    return %arg0, %c0_i32, %arg1 : i32, i32, i32
  }
}

</mosaic_0001>

<llo_original>
// kernel: tpu_custom_call.1
$region0: #{tpu_custom_call.1}
  #allocation0 [shape = 'u32[]', space=smem, size = 0x4, offset = 0x4, fixed_abs, tag = 'smem constant byte address 0x4 - core index']
  #allocation1 [shape = 'u32[144,128]{1,0:T(1,128)}', space=vmem, size = 0x12000, scoped, tag = 'internal scratch']
  %s0 = inlined_call_operand.hbm [shape: f32[2,8,384], index: 0, kind: input, shape index: {}]
  %s1 = inlined_call_operand.hbm [shape: f32[2,8,384], index: 1, kind: input, shape index: {}]
  %s2 = inlined_call_operand.vmem [shape: f32[8,8], index: 2, kind: input, shape index: {}]
  %s3 = inlined_call_operand.hbm [shape: f32[8,8], index: 3, kind: input, shape index: {}]
  %s4 = inlined_call_operand.vmem [shape: f32[8,1], index: 4, kind: input, shape index: {}]
  %s5 = inlined_call_operand.hbm [shape: f32[2,8,384], index: 5, kind: output, shape index: {}]
  %s6 = sld [smem:[#allocation0]]
  $region65: #{tpu_custom_call.1} parent=0
    _
  %s8 = ssub.s32 1, %s6
  %s9 = scalar_select 0, %s8, %s6
  $region1: #{tpu_custom_call.1} parent=0
    #allocation2 [shape = 'u8[8192]{0}', space=vmem, size = 0x2000, scoped, tag = 'input window, operand 0']
    #allocation3 [shape = 's32[2]{0}', space=sflag, size = 0x8, scoped, tag = 'scoped memory for tpu_custom_call.1']
    #allocation4 [shape = 's32[2]{0}', space=sflag, size = 0x8, scoped, tag = 'scoped memory for tpu_custom_call.1']
    #allocation5 [shape = 'u8[8192]{0}', space=vmem, size = 0x2000, scoped, tag = 'input window, operand 1']
    #allocation6 [shape = 's32[2]{0}', space=sflag, size = 0x8, scoped, tag = 'scoped memory for tpu_custom_call.1']
    #allocation7 [shape = 'u8[4096]{0}', space=vmem, size = 0x1000, scoped, tag = 'input window, operand 3, single buffered']
    #allocation8 [shape = 'u8[8192]{0}', space=vmem, size = 0x2000, scoped, tag = 'output window, operand 0']
    %10 = vsyncpa [#allocation3], 0
    %s11 = scalar_lea.sflag [#allocation3], 1
    %12 = vsyncpa %s11, 0
    %13 = vsyncpa [#allocation6], 0
    %s14 = scalar_lea.sflag [#allocation6], 1
    %15 = vsyncpa %s14, 0
    %16 = vsyncpa [#allocation4], 0
    %s17 = scalar_lea.sflag [#allocation4], 1
    %18 = vsyncpa %s17, 0
    loop: start=0, step=1, limit=8
    $region2: #{tpu_custom_call.1} parent=1 // loop_pre_header
      _
    $region3: #{tpu_custom_call.1} parent=1 // loop_header
      %s20 = sphi 0, %s24
      %p21 = scmp.ge.s32.totalorder %s20, 8
      %s27 = sphi 0, %s39
      %s28 = sphi 0, %s35
      %s29 = sphi 0, %s27
      %s30 = sphi 0, %s28
      %s31 = sphi 0, %s29
      %s32 = sphi 0, %s30
      %s44 = sphi 0, %s46
      %s47 = sphi 0, %s44
      %s48 = sphi 0, %s47
      %s64 = sphi 0, %s48
      %s72 = sphi 0, %s74
      %s75 = sphi 0, %s72
      %s76 = sphi 0, %s75
      %s92 = sphi 0, %s76
      %s96 = sphi 0, %s96
      %s98 = sphi 0, %s96
      %s99 = sphi 0, %s98
      %s113 = sphi 0, %s99
      %s117 = sphi 0, %s117
      %s119 = sphi 0, %s117
      %s120 = sphi 0, %s119
      %s134 = sphi 0, %s120
      %s138 = sphi 0, %s138
      %s140 = sphi 0, %s138
      %s141 = sphi 0, %s140
      %s155 = sphi 0, %s141
      %s163 = sphi 0, %s165
      %s166 = sphi 0, %s163
      %s167 = sphi 0, %s166
      %s183 = sphi 0, %s167
    $region4: #{tpu_custom_call.1} parent=1 // loop_header_branch
      %23 = sbr.rel (%p21) target = $region8
    $region5: #{tpu_custom_call.1} parent=1 // loop_body
      %s25 = ssub.s32 %s20, 1
      %s26 = ssub.s32 %s20, 2
      %s33 = sadd.s32 1, %s28
      %p34 = scmp.ge.s32.totalorder %s33, 3
      %s35 = scalar_select %p34, 0, %s33
      %s36 = sadd.s32 1, %s27
      %s37 = scalar_select %p34, %s36, %s27
      %p38 = scmp.ge.s32.totalorder %s37, 2
      %s39 = scalar_select %p38, 0, %s37
      %s40 = ssub.s32 %s27, %s39
      %s41 = ssub.s32 %s28, %s35
      %s42 = sor.u32 %s40, %s41
      %p43 = scmp.eq.s32.totalorder %s42, 0
      %s45 = sadd.s32 %s44, 1
      %s46 = scalar_select %p43, %s44, %s45
      %p49 = pneg %p43
      %p50 = scmp.eq.s32.totalorder %s20, 5
      %p51 = por %p49, %p50
      %p52 = scmp.ne.s32.totalorder %s44, %s47
      %p53 = scmp.eq.s32.totalorder %s20, 0
      %p54 = por %p52, %p53
      %p55 = scmp.ne.s32.totalorder %s44, %s47
      %p56 = scmp.eq.s32.totalorder %s25, 5
      %p57 = por %p55, %p56
      %p58 = scmp.ne.s32.totalorder %s47, %s48
      %p59 = scmp.eq.s32.totalorder %s25, 0
      %p60 = por %p58, %p59
      %p61 = scmp.ne.s32.totalorder %s47, %s48
      %p62 = scmp.eq.s32.totalorder %s26, 5
      %p63 = por %p61, %p62
      %p65 = scmp.ne.s32.totalorder %s48, %s64
      %p66 = scmp.eq.s32.totalorder %s26, 0
      %p67 = por %p65, %p66
      %s68 = ssub.s32 %s27, %s39
      %s69 = ssub.s32 %s28, %s35
      %s70 = sor.u32 %s68, %s69
      %p71 = scmp.eq.s32.totalorder %s70, 0
      %s73 = sadd.s32 %s72, 1
      %s74 = scalar_select %p71, %s72, %s73
      %p77 = pneg %p71
      %p78 = scmp.eq.s32.totalorder %s20, 5
      %p79 = por %p77, %p78
      %p80 = scmp.ne.s32.totalorder %s72, %s75
      %p81 = scmp.eq.s32.totalorder %s20, 0
      %p82 = por %p80, %p81
      %p83 = scmp.ne.s32.totalorder %s72, %s75
      %p84 = scmp.eq.s32.totalorder %s25, 5
      %p85 = por %p83, %p84
      %p86 = scmp.ne.s32.totalorder %s75, %s76
      %p87 = scmp.eq.s32.totalorder %s25, 0
      %p88 = por %p86, %p87
      %p89 = scmp.ne.s32.totalorder %s75, %s76
      %p90 = scmp.eq.s32.totalorder %s26, 5
      %p91 = por %p89, %p90
      %p93 = scmp.ne.s32.totalorder %s76, %s92
      %p94 = scmp.eq.s32.totalorder %s26, 0
      %p95 = por %p93, %p94
      %s97 = sadd.s32 %s96, 1
      %p100 = scmp.eq.s32.totalorder %s20, 5
      %p101 = scmp.ne.s32.totalorder %s96, %s98
      %p102 = scmp.eq.s32.totalorder %s20, 0
      %p103 = por %p101, %p102
      %p104 = scmp.ne.s32.totalorder %s96, %s98
      %p105 = scmp.eq.s32.totalorder %s25, 5
      %p106 = por %p104, %p105
      %p107 = scmp.ne.s32.totalorder %s98, %s99
      %p108 = scmp.eq.s32.totalorder %s25, 0
      %p109 = por %p107, %p108
      %p110 = scmp.ne.s32.totalorder %s98, %s99
      %p111 = scmp.eq.s32.totalorder %s26, 5
      %p112 = por %p110, %p111
      %p114 = scmp.ne.s32.totalorder %s99, %s113
      %p115 = scmp.eq.s32.totalorder %s26, 0
      %p116 = por %p114, %p115
      %s118 = sadd.s32 %s117, 1
      %p121 = scmp.eq.s32.totalorder %s20, 5
      %p122 = scmp.ne.s32.totalorder %s117, %s119
      %p123 = scmp.eq.s32.totalorder %s20, 0
      %p124 = por %p122, %p123
      %p125 = scmp.ne.s32.totalorder %s117, %s119
      %p126 = scmp.eq.s32.totalorder %s25, 5
      %p127 = por %p125, %p126
      %p128 = scmp.ne.s32.totalorder %s119, %s120
      %p129 = scmp.eq.s32.totalorder %s25, 0
      %p130 = por %p128, %p129
      %p131 = scmp.ne.s32.totalorder %s119, %s120
      %p132 = scmp.eq.s32.totalorder %s26, 5
      %p133 = por %p131, %p132
      %p135 = scmp.ne.s32.totalorder %s120, %s134
      %p136 = scmp.eq.s32.totalorder %s26, 0
      %p137 = por %p135, %p136
      %s139 = sadd.s32 %s138, 1
      %p142 = scmp.eq.s32.totalorder %s20, 5
      %p143 = scmp.ne.s32.totalorder %s138, %s140
      %p144 = scmp.eq.s32.totalorder %s20, 0
      %p145 = por %p143, %p144
      %p146 = scmp.ne.s32.totalorder %s138, %s140
      %p147 = scmp.eq.s32.totalorder %s25, 5
      %p148 = por %p146, %p147
      %p149 = scmp.ne.s32.totalorder %s140, %s141
      %p150 = scmp.eq.s32.totalorder %s25, 0
      %p151 = por %p149, %p150
      %p152 = scmp.ne.s32.totalorder %s140, %s141
      %p153 = scmp.eq.s32.totalorder %s26, 5
      %p154 = por %p152, %p153
      %p156 = scmp.ne.s32.totalorder %s141, %s155
      %p157 = scmp.eq.s32.totalorder %s26, 0
      %p158 = por %p156, %p157
      %s159 = ssub.s32 %s27, %s39
      %s160 = ssub.s32 %s28, %s35
      %s161 = sor.u32 %s159, %s160
      %p162 = scmp.eq.s32.totalorder %s161, 0
      %s164 = sadd.s32 %s163, 1
      %s165 = scalar_select %p162, %s163, %s164
      %p168 = pneg %p162
      %p169 = scmp.eq.s32.totalorder %s20, 5
      %p170 = por %p168, %p169
      %p171 = scmp.ne.s32.totalorder %s163, %s166
      %p172 = scmp.eq.s32.totalorder %s20, 0
      %p173 = por %p171, %p172
      %p174 = scmp.ne.s32.totalorder %s163, %s166
      %p175 = scmp.eq.s32.totalorder %s25, 5
      %p176 = por %p174, %p175
      %p177 = scmp.ne.s32.totalorder %s166, %s167
      %p178 = scmp.eq.s32.totalorder %s25, 0
      %p179 = por %p177, %p178
      %p180 = scmp.ne.s32.totalorder %s166, %s167
      %p181 = scmp.eq.s32.totalorder %s26, 5
      %p182 = por %p180, %p181
      %p184 = scmp.ne.s32.totalorder %s167, %s183
      %p185 = scmp.eq.s32.totalorder %s26, 0
      %p186 = por %p184, %p185
      %p187 = scmp.le.s32.totalorder 1, %s20
      %p188 = scmp.lt.s32.totalorder %s20, 7
      %p189 = pnand %p187, %p188
      %p190 = pneg %p189
      // Predicated region
      $region9: #{tpu_custom_call.1} parent=5 // pred_check
        _
      $region10: #{tpu_custom_call.1} parent=5 // pred_check_branch
        %192 = sbr.rel (%p189) target = $region12
      $region11: #{tpu_custom_call.1} parent=5 // pred_region
        %s193 = ssub.s32 %s20, 1
        // Predicated region
        $region13: #{tpu_custom_call.1} parent=11 // pred_check
          %p194 = pneg %p109
        $region14: #{tpu_custom_call.1} parent=11 // pred_check_branch
          %196 = sbr.rel (%p194) target = $region16
        $region15: #{tpu_custom_call.1} parent=11 // pred_region
          _
        $region16: #{tpu_custom_call.1} parent=11 // pred_fallthru
          _
        // Predicated region
        $region17: #{tpu_custom_call.1} parent=11 // pred_check
          %p197 = pneg %p130
        $region18: #{tpu_custom_call.1} parent=11 // pred_check_branch
          %199 = sbr.rel (%p197) target = $region20
        $region19: #{tpu_custom_call.1} parent=11 // pred_region
          %s201 = ssub.s32 128, 128
          %202 = vsyncadd [#allocation6], %s201
          %s204 = sshll.u32 [#allocation7], 4
          %s205 = int_to_ptr.vmem [resolvable:$true] %s204
          %207 = dma.hbm_to_vmem [thread:$0]  %s3, 128, %s205, [#allocation6]
        $region20: #{tpu_custom_call.1} parent=11 // pred_fallthru
          _
        // Predicated region
        $region21: #{tpu_custom_call.1} parent=11 // pred_check
          %p208 = pneg %p151
        $region22: #{tpu_custom_call.1} parent=11 // pred_check_branch
          %210 = sbr.rel (%p208) target = $region24
        $region23: #{tpu_custom_call.1} parent=11 // pred_region
          _
        $region24: #{tpu_custom_call.1} parent=11 // pred_fallthru
          _
      $region12: #{tpu_custom_call.1} parent=5 // pred_fallthru
        _
      %p211 = scmp.lt.s32.totalorder %s20, 6
      // Predicated region
      $region25: #{tpu_custom_call.1} parent=5 // pred_check
        %p212 = pneg %p211
      $region26: #{tpu_custom_call.1} parent=5 // pred_check_branch
        %214 = sbr.rel (%p212) target = $region28
      $region27: #{tpu_custom_call.1} parent=5 // pred_region
        // Predicated region
        $region29: #{tpu_custom_call.1} parent=27 // pred_check
          %p215 = pneg %p54
        $region30: #{tpu_custom_call.1} parent=27 // pred_check_branch
          %217 = sbr.rel (%p215) target = $region32
        $region31: #{tpu_custom_call.1} parent=27 // pred_region
          %s218 = sand.u32 %s44, 1
          %s219 = scalar_lea.sflag [#allocation3], %s218
          %s220 = sand.u32 %s44, 1
          %s221 = smul.addr %s220, 8
          %s222 = scalar_lea.vmem [#allocation2], %s221
          %s224 = ssub.s32 128, 128
          %225 = vsyncadd %s219, %s224
          %s226 = smul.addr %s27, 3
          %s227 = sadd.s32 %s28, %s226
          %s228 = smul.addr %s227, 128
          %s229 = scalar_lea.hbm %s0, %s228
          %s231 = sshll.u32 %s222, 4
          %s232 = int_to_ptr.vmem [resolvable:$true] %s231
          %234 = dma.hbm_to_vmem [thread:$0]  %s229, 128, %s232, %s219
        $region32: #{tpu_custom_call.1} parent=27 // pred_fallthru
          _
        // Predicated region
        $region33: #{tpu_custom_call.1} parent=27 // pred_check
          %p235 = pneg %p82
        $region34: #{tpu_custom_call.1} parent=27 // pred_check_branch
          %237 = sbr.rel (%p235) target = $region36
        $region35: #{tpu_custom_call.1} parent=27 // pred_region
          %s238 = sand.u32 %s20, 1
          %s239 = scalar_lea.sflag [#allocation6], %s238
          %s240 = sand.u32 %s72, 1
          %s241 = smul.addr %s240, 8
          %s242 = scalar_lea.vmem [#allocation5], %s241
          %s244 = ssub.s32 128, 128
          %245 = vsyncadd %s239, %s244
          %s246 = smul.addr %s27, 3
          %s247 = sadd.s32 %s28, %s246
          %s248 = smul.addr %s247, 128
          %s249 = scalar_lea.hbm %s1, %s248
          %s251 = sshll.u32 %s242, 4
          %s252 = int_to_ptr.vmem [resolvable:$true] %s251
          %254 = dma.hbm_to_vmem [thread:$0]  %s249, 128, %s252, %s239
        $region36: #{tpu_custom_call.1} parent=27 // pred_fallthru
          _
      $region28: #{tpu_custom_call.1} parent=5 // pred_fallthru
        _
      %p255 = scmp.le.s32.totalorder 1, %s20
      %p256 = scmp.lt.s32.totalorder %s20, 7
      %p257 = pnand %p255, %p256
      %p258 = pneg %p257
      // Predicated region
      $region37: #{tpu_custom_call.1} parent=5 // pred_check
        _
      $region38: #{tpu_custom_call.1} parent=5 // pred_check_branch
        %260 = sbr.rel (%p257) target = $region40
      $region39: #{tpu_custom_call.1} parent=5 // pred_region
        %s261 = ssub.s32 %s20, 1
        %s262 = sand.u32 %s47, 1
        %s263 = scalar_lea.sflag [#allocation3], %s262
        %s264 = sand.u32 %s47, 1
        %s265 = smul.addr %s264, 8
        %s266 = scalar_lea.vmem [#allocation2], %s265
        // Predicated region
        $region41: #{tpu_custom_call.1} parent=39 // pred_check
          %p267 = pneg %p60
        $region42: #{tpu_custom_call.1} parent=39 // pred_check_branch
          %269 = sbr.rel (%p267) target = $region44
        $region43: #{tpu_custom_call.1} parent=39 // pred_region
          %270 = dma.done %s263, 128
        $region44: #{tpu_custom_call.1} parent=39 // pred_fallthru
          _
        %s271 = sand.u32 %s25, 1
        %s272 = scalar_lea.sflag [#allocation6], %s271
        %s273 = sand.u32 %s75, 1
        %s274 = smul.addr %s273, 8
        %s275 = scalar_lea.vmem [#allocation5], %s274
        // Predicated region
        $region45: #{tpu_custom_call.1} parent=39 // pred_check
          %p276 = pneg %p88
        $region46: #{tpu_custom_call.1} parent=39 // pred_check_branch
          %278 = sbr.rel (%p276) target = $region48
        $region47: #{tpu_custom_call.1} parent=39 // pred_region
          %279 = dma.done %s272, 128
        $region48: #{tpu_custom_call.1} parent=39 // pred_fallthru
          _
        // Predicated region
        $region49: #{tpu_custom_call.1} parent=39 // pred_check
          %p280 = pneg %p130
        $region50: #{tpu_custom_call.1} parent=39 // pred_check_branch
          %282 = sbr.rel (%p280) target = $region52
        $region51: #{tpu_custom_call.1} parent=39 // pred_region
          %283 = dma.done [#allocation6], 128
        $region52: #{tpu_custom_call.1} parent=39 // pred_fallthru
          _
        %s284 = sand.u32 %s47, 1
        %s285 = scalar_lea.sflag [#allocation3], %s284
        %s286 = sand.u32 %s47, 1
        %s287 = smul.addr %s286, 8
        %s288 = scalar_lea.vmem [#allocation2], %s287
        %p289 = pneg %p60
        %p290 = pneg %p57
        %s291 = sand.u32 %s25, 1
        %s292 = scalar_lea.sflag [#allocation6], %s291
        %s293 = sand.u32 %s75, 1
        %s294 = smul.addr %s293, 8
        %s295 = scalar_lea.vmem [#allocation5], %s294
        %p296 = pneg %p88
        %p297 = pneg %p85
        %p298 = pneg %p109
        %p299 = pneg %p106
        %p300 = pneg %p130
        %p301 = pneg %p127
        %p302 = pneg %p151
        %p303 = pneg %p148
        %p304 = pneg %p179
        %p305 = pneg %p176
        %s306 = sand.u32 %s166, 1
        %s307 = scalar_lea.sflag [#allocation4], %s306
        %s308 = sand.u32 %s166, 1
        %s309 = smul.addr %s308, 8
        %s310 = scalar_lea.vmem [#allocation8], %s309
        %v311 = vld [vmem:[%s2] sm:$0xff]
        %v312 = vld [vmem:[%s266] sm:$0xff]
        %v313 = vld [vmem:[#allocation7] sm:$0xff]
        %v314 = vld [vmem:[%s275] sm:$0xff]
        %vm315 = vcmask 64512
        %v317 = vsel %vm315, %v313, 0
        %319 = vmatprep.subr.mxu0 0.0
        %320 = vmatpush1.msra.mxu0 0.0
        %321 = vmatprep.subr.mxu0 0.0
        %322 = vmatpush1.msra.mxu0 0.0
        %323 = vmatprep.subr.mxu0 0.0
        %324 = vmatpush1.msra.mxu0 0.0
        %325 = vmatprep.subr.mxu0 0.0
        %326 = vmatpush1.msra.mxu0 0.0
        %327 = vmatprep.subr.mxu0 0.0
        %328 = vmatpush1.msra.mxu0 0.0
        %329 = vmatprep.subr.mxu0 0.0
        %330 = vmatpush1.msra.mxu0 0.0
        %331 = vmatprep.subr.mxu0 0.0
        %332 = vmatpush1.msra.mxu0 0.0
        %333 = vmatprep.subr.mxu0 0.0
        %334 = vmatpush1.msra.mxu0 0.0
        %335 = vmatprep.subr.mxu0 0.0
        %336 = vmatpush1.msra.mxu0 0.0
        %337 = vmatprep.subr.mxu0 0.0
        %338 = vmatpush1.msra.mxu0 0.0
        %339 = vmatprep.subr.mxu0 0.0
        %340 = vmatpush1.msra.mxu0 0.0
        %341 = vmatprep.subr.mxu0 0.0
        %342 = vmatpush1.msra.mxu0 0.0
        %343 = vmatprep.subr.mxu0 0.0
        %344 = vmatpush1.msra.mxu0 0.0
        %345 = vmatprep.subr.mxu0 0.0
        %346 = vmatpush1.msra.mxu0 0.0
        %347 = vmatprep.subr.mxu0 0.0
        %348 = vmatpush1.msra.mxu0 0.0
        %349 = vmatprep.subr.mxu0 0.0
        %350 = vmatpush1.msra.mxu0 %v314
        %351 = vmatprep.subr.mxu0 0.0
        %352 = vmatpush2.msra.mxu0 0.0
        %353 = vmatprep.subr.mxu0 0.0
        %354 = vmatpush2.msra.mxu0 0.0
        %355 = vmatprep.subr.mxu0 0.0
        %356 = vmatpush2.msra.mxu0 0.0
        %357 = vmatprep.subr.mxu0 0.0
        %358 = vmatpush2.msra.mxu0 0.0
        %359 = vmatprep.subr.mxu0 0.0
        %360 = vmatpush2.msra.mxu0 0.0
        %361 = vmatprep.subr.mxu0 0.0
        %362 = vmatpush2.msra.mxu0 0.0
        %363 = vmatprep.subr.mxu0 0.0
        %364 = vmatpush2.msra.mxu0 0.0
        %365 = vmatprep.subr.mxu0 0.0
        %366 = vmatpush2.msra.mxu0 0.0
        %367 = vmatprep.subr.mxu0 0.0
        %368 = vmatpush2.msra.mxu0 0.0
        %369 = vmatprep.subr.mxu0 0.0
        %370 = vmatpush2.msra.mxu0 0.0
        %371 = vmatprep.subr.mxu0 0.0
        %372 = vmatpush2.msra.mxu0 0.0
        %373 = vmatprep.subr.mxu0 0.0
        %374 = vmatpush2.msra.mxu0 0.0
        %375 = vmatprep.subr.mxu0 0.0
        %376 = vmatpush2.msra.mxu0 0.0
        %377 = vmatprep.subr.mxu0 0.0
        %378 = vmatpush2.msra.mxu0 0.0
        %379 = vmatprep.subr.mxu0 0.0
        %380 = vmatpush2.msra.mxu0 0.0
        %381 = vmatprep.subr.mxu0 0.0
        %382 = vmatpush2.msra.mxu0 0.0
        %383 = vmatprep.mubr.f32.mxu0 0.0
        %384 = vmatmul.mubr.f32.gmra.mxu0 %v317
        %v385 = vpop.f32.mrf.mxu0
        %v386 = vadd.f32 0.0, %v385
        %v387 = vpop.f32.mrf.mxu0
        %388 = vdwg.mxu0
        %v390 = vsel %vm315, %v311, 0
        %392 = vmatprep.subr.mxu0 0.0
        %393 = vmatpush1.msra.mxu0 0.0
        %394 = vmatprep.subr.mxu0 0.0
        %395 = vmatpush1.msra.mxu0 0.0
        %396 = vmatprep.subr.mxu0 0.0
        %397 = vmatpush1.msra.mxu0 0.0
        %398 = vmatprep.subr.mxu0 0.0
        %399 = vmatpush1.msra.mxu0 0.0
        %400 = vmatprep.subr.mxu0 0.0
        %401 = vmatpush1.msra.mxu0 0.0
        %402 = vmatprep.subr.mxu0 0.0
        %403 = vmatpush1.msra.mxu0 0.0
        %404 = vmatprep.subr.mxu0 0.0
        %405 = vmatpush1.msra.mxu0 0.0
        %406 = vmatprep.subr.mxu0 0.0
        %407 = vmatpush1.msra.mxu0 0.0
        %408 = vmatprep.subr.mxu0 0.0
        %409 = vmatpush1.msra.mxu0 0.0
        %410 = vmatprep.subr.mxu0 0.0
        %411 = vmatpush1.msra.mxu0 0.0
        %412 = vmatprep.subr.mxu0 0.0
        %413 = vmatpush1.msra.mxu0 0.0
        %414 = vmatprep.subr.mxu0 0.0
        %415 = vmatpush1.msra.mxu0 0.0
        %416 = vmatprep.subr.mxu0 0.0
        %417 = vmatpush1.msra.mxu0 0.0
        %418 = vmatprep.subr.mxu0 0.0
        %419 = vmatpush1.msra.mxu0 0.0
        %420 = vmatprep.subr.mxu0 0.0
        %421 = vmatpush1.msra.mxu0 0.0
        %422 = vmatprep.subr.mxu0 0.0
        %423 = vmatpush1.msra.mxu0 %v312
        %424 = vmatprep.subr.mxu0 0.0
        %425 = vmatpush2.msra.mxu0 0.0
        %426 = vmatprep.subr.mxu0 0.0
        %427 = vmatpush2.msra.mxu0 0.0
        %428 = vmatprep.subr.mxu0 0.0
        %429 = vmatpush2.msra.mxu0 0.0
        %430 = vmatprep.subr.mxu0 0.0
        %431 = vmatpush2.msra.mxu0 0.0
        %432 = vmatprep.subr.mxu0 0.0
        %433 = vmatpush2.msra.mxu0 0.0
        %434 = vmatprep.subr.mxu0 0.0
        %435 = vmatpush2.msra.mxu0 0.0
        %436 = vmatprep.subr.mxu0 0.0
        %437 = vmatpush2.msra.mxu0 0.0
        %438 = vmatprep.subr.mxu0 0.0
        %439 = vmatpush2.msra.mxu0 0.0
        %440 = vmatprep.subr.mxu0 0.0
        %441 = vmatpush2.msra.mxu0 0.0
        %442 = vmatprep.subr.mxu0 0.0
        %443 = vmatpush2.msra.mxu0 0.0
        %444 = vmatprep.subr.mxu0 0.0
        %445 = vmatpush2.msra.mxu0 0.0
        %446 = vmatprep.subr.mxu0 0.0
        %447 = vmatpush2.msra.mxu0 0.0
        %448 = vmatprep.subr.mxu0 0.0
        %449 = vmatpush2.msra.mxu0 0.0
        %450 = vmatprep.subr.mxu0 0.0
        %451 = vmatpush2.msra.mxu0 0.0
        %452 = vmatprep.subr.mxu0 0.0
        %453 = vmatpush2.msra.mxu0 0.0
        %454 = vmatprep.subr.mxu0 0.0
        %455 = vmatpush2.msra.mxu0 0.0
        %456 = vmatprep.mubr.f32.mxu0 0.0
        %457 = vmatmul.mubr.f32.gmra.mxu0 %v390
        %v458 = vpop.f32.mrf.mxu0
        %v459 = vadd.f32 %v386, %v458
        %v460 = vpop.f32.mrf.mxu0
        %461 = vdwg.mxu0
        %v462 = vld [vmem:[%s4] sm:$0xff]
        %464 = vset.pattern.permute.xlu0 0
        %465 = vperm.xlu0 %464, %v462
        %v466 = vpop.permute.xlu0 %465
        %v468 = vadd.f32 %v459, %v466
        %v469 = vmax.f32 %v468, 0.0
        %470 = vst [vmem:[%s310] sm:$0xff] %v469
        %s471 = sand.u32 %s166, 1
        %s472 = scalar_lea.sflag [#allocation4], %s471
        %s473 = sand.u32 %s166, 1
        %s474 = smul.addr %s473, 8
        %s475 = scalar_lea.vmem [#allocation8], %s474
        // Predicated region
        $region53: #{tpu_custom_call.1} parent=39 // pred_check
          %p476 = pneg %p176
        $region54: #{tpu_custom_call.1} parent=39 // pred_check_branch
          %478 = sbr.rel (%p476) target = $region56
        $region55: #{tpu_custom_call.1} parent=39 // pred_region
          %s480 = ssub.s32 128, 128
          %481 = vsyncadd %s472, %s480
          %s482 = smul.addr %s29, 3
          %s483 = sadd.s32 %s30, %s482
          %s484 = smul.addr %s483, 128
          %s485 = scalar_lea.hbm %s5, %s484
          %s487 = sshll.u32 %s475, 4
          %s488 = int_to_ptr.vmem [resolvable:$true] %s487
          %490 = dma.vmem_to_hbm [thread:$0]  %s488, 128, %s485, %s472
        $region56: #{tpu_custom_call.1} parent=39 // pred_fallthru
          _
      $region40: #{tpu_custom_call.1} parent=5 // pred_fallthru
        _
      %p491 = scmp.le.s32.totalorder 2, %s20
      // Predicated region
      $region57: #{tpu_custom_call.1} parent=5 // pred_check
        %p492 = pneg %p491
      $region58: #{tpu_custom_call.1} parent=5 // pred_check_branch
        %494 = sbr.rel (%p492) target = $region60
      $region59: #{tpu_custom_call.1} parent=5 // pred_region
        %s495 = ssub.s32 %s20, 2
        // Predicated region
        $region61: #{tpu_custom_call.1} parent=59 // pred_check
          %p496 = pneg %p182
        $region62: #{tpu_custom_call.1} parent=59 // pred_check_branch
          %498 = sbr.rel (%p496) target = $region64
        $region63: #{tpu_custom_call.1} parent=59 // pred_region
          %s499 = sand.u32 %s167, 1
          %s500 = scalar_lea.sflag [#allocation4], %s499
          %s501 = sand.u32 %s167, 1
          %s502 = smul.addr %s501, 8
          %s503 = scalar_lea.vmem [#allocation8], %s502
          %504 = dma.done %s500, 128
        $region64: #{tpu_custom_call.1} parent=59 // pred_fallthru
          _
      $region60: #{tpu_custom_call.1} parent=5 // pred_fallthru
        _
    $region6: #{tpu_custom_call.1} parent=1 // loop_footer
      %s24 = sadd.s32 1, %s20
    $region7: #{tpu_custom_call.1} parent=1 // loop_footer_branch
      %19 = sbr.rel target = $region3
    $region8: #{tpu_custom_call.1} parent=1 // loop_exit
      _
    %505 = vsyncpa [#allocation3], 1
    %s506 = scalar_lea.sflag [#allocation3], 1
    %507 = vsyncpa %s506, 1
    %508 = vsyncpa [#allocation6], 1
    %s509 = scalar_lea.sflag [#allocation6], 1
    %510 = vsyncpa %s509, 1
    %511 = vsyncpa [#allocation4], 1
    %s512 = scalar_lea.sflag [#allocation4], 1
    %513 = vsyncpa %s512, 1

</llo_original>
